<compile_context>
chip_gen: v5e
topology: v5e:2x2
jax: 0.10.0
libtpu: 0.0.40
codegen_flags: <defaults>
</compile_context>

<pallas_src>
import jax
import jax.numpy as jnp
from jax.experimental import pallas as pl
from jax.experimental.pallas import tpu as pltpu


def _round_up(x, m):
    return ((x + m - 1) // m) * m


def _balanced_tile(dim, tile_max, align):
    """Pick a tile <= ~tile_max (aligned) that splits `dim` into equal-ish chunks,
    so edge padding never approaches a full tile."""
    padded = _round_up(dim, align)
    if padded <= tile_max:
        return padded
    num_tiles = pl.cdiv(padded, tile_max)
    return _round_up(pl.cdiv(padded, num_tiles), align)


# ---------------------------------------------------------------------------
# Kernels
# ---------------------------------------------------------------------------

def linear_kernel_resident(x_ref, w_ref, b_ref, o_ref):
    """Fast path: W/bias VMEM-resident (fetched once), 1-D grid over M.
    x_ref: (tm, K), w_ref: (K, N), b_ref: (1, N), o_ref: (tm, N)."""
    o_ref[...] = (
        jnp.dot(x_ref[...], w_ref[...], preferred_element_type=jnp.float32)
        + b_ref[...].astype(jnp.float32)
    ).astype(o_ref.dtype)


def linear_kernel_f32(x_ref, w_ref, b_ref, o_ref):
    """General path, f32 output: accumulate directly into the (K-resident)
    output block — no scratch, no acc->out copy."""
    k = pl.program_id(2)

    @pl.when(k == 0)
    def _():
        o_ref[...] = jnp.zeros_like(o_ref)

    o_ref[...] += jnp.dot(x_ref[...], w_ref[...], preferred_element_type=jnp.float32)

    @pl.when(k == pl.num_programs(2) - 1)
    def _():
        o_ref[...] += b_ref[...].astype(jnp.float32)


def linear_kernel_acc(x_ref, w_ref, b_ref, o_ref, acc_ref):
    """General path, non-f32 output: f32 VMEM accumulator + cast epilogue."""
    k = pl.program_id(2)

    @pl.when(k == 0)
    def _():
        acc_ref[...] = jnp.zeros_like(acc_ref)

    acc_ref[...] += jnp.dot(x_ref[...], w_ref[...], preferred_element_type=jnp.float32)

    @pl.when(k == pl.num_programs(2) - 1)
    def _():
        o_ref[...] = (acc_ref[...] + b_ref[...].astype(jnp.float32)).astype(o_ref.dtype)


# ---------------------------------------------------------------------------
# Wrapper
# ---------------------------------------------------------------------------

_VMEM_LIMIT = 48 * 1024 * 1024          # safe on v7x (64 MiB physical), fine on v5e/v6e
_FAST_PATH_W_BYTES = 8 * 1024 * 1024    # W (+bias) resident in VMEM below this
_FAST_PATH_BUDGET = 40 * 1024 * 1024    # total VMEM budget for the fast path


def linear_regression_forward(x, w, b, *, tm_max=1024, tn_max=1024, tk_max=512):
    """Pallas forward of nn.Linear: y = x @ w.T + b  (w: (D_out, D_in), b: (D_out,))."""
    batch, input_dim = x.shape
    output_dim, _ = w.shape
    out_dtype = x.dtype
    itemsize = x.dtype.itemsize

    # Alignment: M to 8 sublanes, N/K to 128 lanes; use 256 for large N to fill
    # the 256x256 MXU on v6e/v7x (128 for small heads to limit wasted edge work).
    m_align = 8
    n_align = 256 if output_dim > 128 else 128
    k_align = 256 if input_dim > 128 else 128

    n_aligned = _round_up(output_dim, n_align)
    k_aligned = _round_up(input_dim, k_align)

    # ---- decide fast path: W (+bias) VMEM-resident, 1-D grid over M ----
    w_resident_bytes = k_aligned * n_aligned * itemsize + n_aligned * 4
    fast_path = w_resident_bytes <= _FAST_PATH_W_BYTES

    if fast_path:
        tn, tk = n_aligned, k_aligned
        n_pad, k_pad = n_aligned, k_aligned
        # Cap tm so double-buffered x/out rows + resident W fit the budget.
        per_row = 2 * (k_pad + n_pad) * 4
        tm_cap = (_FAST_PATH_BUDGET - 2 * w_resident_bytes) // per_row
        tm_cap = max(m_align, (tm_cap // m_align) * m_align)
        tm = _balanced_tile(batch, min(tm_max, tm_cap), m_align)
    else:
        tn = _balanced_tile(output_dim, tn_max, n_align)
        tk = _balanced_tile(input_dim, tk_max, k_align)
        n_pad = _round_up(output_dim, tn)
        k_pad = _round_up(input_dim, tk)
        tm = _balanced_tile(batch, tm_max, m_align)

    m_pad = _round_up(batch, tm)

    # ---- pad only when needed (extra HBM passes are not free) ----
    xp = x
    if (m_pad, k_pad) != (batch, input_dim):
        xp = jnp.pad(x, ((0, m_pad - batch), (0, k_pad - input_dim)))

    wp = w
    if (n_pad, k_pad) != (output_dim, input_dim):
        wp = jnp.pad(w, ((0, n_pad - output_dim), (0, k_pad - input_dim)))
    # One-time static relayout: kernel consumes a standard (K, N) RHS.
    wt = wp.T

    bp = b if n_pad == output_dim else jnp.pad(b, (0, n_pad - output_dim))
    bp = bp.reshape(1, n_pad).astype(jnp.float32)

    if fast_path:
        grid = (m_pad // tm,)
        cost = pl.CostEstimate(
            flops=2 * m_pad * k_pad * n_pad,
            transcendentals=0,
            bytes_accessed=itemsize * (m_pad * k_pad + k_pad * n_pad + m_pad * n_pad)
            + 4 * n_pad,
        )
        out = pl.pallas_call(
            linear_kernel_resident,
            out_shape=jax.ShapeDtypeStruct((m_pad, n_pad), out_dtype),
            grid_spec=pltpu.PrefetchScalarGridSpec(
                num_scalar_prefetch=0,
                grid=grid,
                in_specs=[
                    pl.BlockSpec((tm, k_pad), lambda i: (i, 0)),      # x tile, streamed over M
                    pl.BlockSpec((k_pad, n_pad), lambda i: (0, 0)),   # W: fetched once, resident
                    pl.BlockSpec((1, n_pad), lambda i: (0, 0)),       # bias: resident
                ],
                out_specs=pl.BlockSpec((tm, n_pad), lambda i: (i, 0)),
            ),
            compiler_params=pltpu.CompilerParams(
                dimension_semantics=("parallel",),
                vmem_limit_bytes=_VMEM_LIMIT,
            ),
            cost_estimate=cost,
        )(xp, wt, bp)
    else:
        grid = (m_pad // tm, n_pad // tn, k_pad // tk)
        grid_m, grid_n, _ = grid
        cost = pl.CostEstimate(
            flops=2 * m_pad * k_pad * n_pad,
            transcendentals=0,
            # Account for x re-read grid_n times and W re-read grid_m times.
            bytes_accessed=itemsize
            * (m_pad * k_pad * grid_n + k_pad * n_pad * grid_m + m_pad * n_pad)
            + 4 * n_pad,
        )
        if out_dtype == jnp.float32:
            kernel = linear_kernel_f32
            scratch = []
        else:
            kernel = linear_kernel_acc
            scratch = [pltpu.VMEM((tm, tn), jnp.float32)]
        out = pl.pallas_call(
            kernel,
            out_shape=jax.ShapeDtypeStruct((m_pad, n_pad), out_dtype),
            grid_spec=pltpu.PrefetchScalarGridSpec(
                num_scalar_prefetch=0,
                grid=grid,
                in_specs=[
                    pl.BlockSpec((tm, tk), lambda i, j, k: (i, k)),   # x tile
                    pl.BlockSpec((tk, tn), lambda i, j, k: (k, j)),   # W^T tile (standard K,N)
                    pl.BlockSpec((1, tn), lambda i, j, k: (0, j)),    # bias tile (N only)
                ],
                out_specs=pl.BlockSpec((tm, tn), lambda i, j, k: (i, j)),
                scratch_shapes=scratch,
            ),
            compiler_params=pltpu.CompilerParams(
                dimension_semantics=("parallel", "parallel", "arbitrary"),
                vmem_limit_bytes=_VMEM_LIMIT,
            ),
            cost_estimate=cost,
        )(xp, wt, bp)

    # Slice padded result back to the logical shape only when needed.
    if (m_pad, n_pad) != (batch, output_dim):
        out = out[:batch, :output_dim]
    return out


if __name__ == "__main__":
    # Small shapes consistent with LinearRegression(input_dim, output_dim).
    batch, input_dim, output_dim = 8, 32, 16

    key = jax.random.PRNGKey(0)
    kx, kw, kb = jax.random.split(key, 3)

    x = jax.random.normal(kx, (batch, input_dim), dtype=jnp.float32)
    # PyTorch-style uniform(-1/sqrt(fan_in), 1/sqrt(fan_in)) init.
    bound = 1.0 / (input_dim ** 0.5)
    w = jax.random.uniform(kw, (output_dim, input_dim),
                           minval=-bound, maxval=bound, dtype=jnp.float32)
    b = jax.random.uniform(kb, (output_dim,),
                           minval=-bound, maxval=bound, dtype=jnp.float32)

    y = linear_regression_forward(x, w, b)
    y = jax.block_until_ready(y)

    # Reference check against plain JAX.
    y_ref = x @ w.T + b
    assert y.shape == (batch, output_dim)
    assert jnp.allclose(y, y_ref, atol=1e-5, rtol=1e-5)

    print("KERNEL_OK")
</pallas_src>

<mosaic_0001>
module attributes {stable_mosaic.version = 11 : i64} {
  func.func @linear_kernel_resident(%arg0: i32, %arg1: memref<8x128xf32, #tpu.memory_space<vmem>>, %arg2: memref<128x128xf32, #tpu.memory_space<vmem>>, %arg3: memref<1x128xf32, #tpu.memory_space<vmem>>, %arg4: memref<8x128xf32, #tpu.memory_space<vmem>>) attributes {dimension_semantics = [#tpu.dimension_semantics<parallel>], iteration_bounds = array<i64: 1>, scalar_prefetch = 0 : i64, scratch_operands = 0 : i64, tpu.core_type = #tpu.core_type<tc>, window_params = [{transform_indices = @transform_0, window_bounds = array<i64: 8, 128>}, {pipeline_mode = #tpu.pipeline_mode<synchronous>, transform_indices = @transform_1, window_bounds = array<i64: 128, 128>}, {pipeline_mode = #tpu.pipeline_mode<synchronous>, transform_indices = @transform_2, window_bounds = array<i64: 1, 128>}, {transform_indices = @transform_3, window_bounds = array<i64: 8, 128>}]} {
    %c0 = arith.constant 0 : index
    %c0_0 = arith.constant 0 : index
    %0 = vector.load %arg1[%c0, %c0_0] : memref<8x128xf32, #tpu.memory_space<vmem>>, vector<8x128xf32>
    %c0_1 = arith.constant 0 : index
    %c0_2 = arith.constant 0 : index
    %1 = vector.load %arg2[%c0_1, %c0_2] : memref<128x128xf32, #tpu.memory_space<vmem>>, vector<128x128xf32>
    %cst = arith.constant dense<0.000000e+00> : vector<8x128xf32>
    %2 = tpu.matmul %0, %1, %cst {dimension_numbers = #tpu.dot_dimension_numbers<[1], [0], [0], [1], [0, 0, 1, 1], [], []>} : vector<8x128xf32>, vector<128x128xf32>, vector<8x128xf32> -> vector<8x128xf32>
    %c0_3 = arith.constant 0 : index
    %c0_4 = arith.constant 0 : index
    %3 = vector.load %arg3[%c0_3, %c0_4] : memref<1x128xf32, #tpu.memory_space<vmem>>, vector<1x128xf32>
    %4 = vector.broadcast %3 : vector<1x128xf32> to vector<8x128xf32>
    %5 = arith.addf %2, %4 : vector<8x128xf32>
    %c0_5 = arith.constant 0 : index
    %c0_6 = arith.constant 0 : index
    %6 = vector.load %arg4[%c0_5, %c0_6] : memref<8x128xf32, #tpu.memory_space<vmem>>, vector<8x128xf32>
    tpu.vector_store %arg4[%c0_5, %c0_6], %5 {strides = array<i32>} : memref<8x128xf32, #tpu.memory_space<vmem>>, vector<8x128xf32>,
    return
  }
  func.func @transform_0(%arg0: i32) -> (i32, i32) {
    %c0_i32 = arith.constant 0 : i32
    %c0_i32_0 = arith.constant 0 : i32
    return %arg0, %c0_i32 : i32, i32
  }
  func.func @transform_1(%arg0: i32) -> (i32, i32) {
    %c0_i32 = arith.constant 0 : i32
    %c0_i32_0 = arith.constant 0 : i32
    %c0_i32_1 = arith.constant 0 : i32
    return %c0_i32, %c0_i32_0 : i32, i32
  }
  func.func @transform_2(%arg0: i32) -> (i32, i32) {
    %c0_i32 = arith.constant 0 : i32
    %c0_i32_0 = arith.constant 0 : i32
    %c0_i32_1 = arith.constant 0 : i32
    return %c0_i32, %c0_i32_0 : i32, i32
  }
  func.func @transform_3(%arg0: i32) -> (i32, i32) {
    %c0_i32 = arith.constant 0 : i32
    %c0_i32_0 = arith.constant 0 : i32
    return %arg0, %c0_i32 : i32, i32
  }
}

</mosaic_0001>

<llo_original>
// kernel: tpu_custom_call.1
$region0: #{tpu_custom_call.1}
  #allocation0 [shape = 'u32[]', space=smem, size = 0x4, offset = 0x4, fixed_abs, tag = 'smem constant byte address 0x4 - core index']
  #allocation1 [shape = 'u32[72,128]{1,0:T(1,128)}', space=vmem, size = 0x9000, scoped, tag = 'internal scratch']
  %s0 = inlined_call_operand.hbm [shape: f32[8,128], index: 0, kind: input, shape index: {}]
  %s1 = inlined_call_operand.hbm [shape: f32[128,128], index: 1, kind: input, shape index: {}]
  %s2 = inlined_call_operand.vmem [shape: f32[1,128], index: 2, kind: input, shape index: {}]
  %s3 = inlined_call_operand.hbm [shape: f32[8,128], index: 3, kind: output, shape index: {}]
  %s4 = sld [smem:[#allocation0]]
  $region30: #{tpu_custom_call.1} parent=0
    _
  %s6 = ssub.s32 1, %s4
  %s7 = scalar_select 0, %s6, %s4
  $region1: #{tpu_custom_call.1} parent=0
    #allocation2 [shape = 'u8[4096]{0}', space=vmem, size = 0x1000, scoped, tag = 'input window, operand 0, single buffered']
    #allocation3 [shape = 's32[1]{0}', space=sflag, size = 0x4, scoped, tag = 'scoped memory for tpu_custom_call.1']
    #allocation4 [shape = 's32[1]{0}', space=sflag, size = 0x4, scoped, tag = 'scoped memory for tpu_custom_call.1']
    #allocation5 [shape = 'u8[65536]{0}', space=vmem, size = 0x10000, scoped, tag = 'input window, operand 1, single buffered']
    #allocation6 [shape = 's32[1]{0}', space=sflag, size = 0x4, scoped, tag = 'scoped memory for tpu_custom_call.1']
    #allocation7 [shape = 'u8[4096]{0}', space=vmem, size = 0x1000, scoped, tag = 'output window, operand 0, single buffered']
    %8 = vsyncpa [#allocation3], 0
    %9 = vsyncpa [#allocation6], 0
    %10 = vsyncpa [#allocation4], 0
    // Predicated region
    $region2: #{tpu_custom_call.1} parent=1 // pred_check
      _
    $region3: #{tpu_custom_call.1} parent=1 // pred_check_branch
      %12 = sbr.rel (0) target = $region5
    $region4: #{tpu_custom_call.1} parent=1 // pred_region
      %14 = vsyncadd [#allocation3], 0
      %s16 = sshll.u32 %s0, 4
      %s17 = int_to_ptr.hbm [resolvable:$true] %s16
      %s18 = sshll.u32 [#allocation2], 4
      %s19 = int_to_ptr.vmem [resolvable:$true] %s18
      %21 = dma.hbm_to_vmem [thread:$0]  %s17, 128, %s19, [#allocation3]
    $region5: #{tpu_custom_call.1} parent=1 // pred_fallthru
      _
    // Predicated region
    $region6: #{tpu_custom_call.1} parent=1 // pred_check
      _
    $region7: #{tpu_custom_call.1} parent=1 // pred_check_branch
      %23 = sbr.rel (0) target = $region9
    $region8: #{tpu_custom_call.1} parent=1 // pred_region
      %25 = vsyncadd [#allocation6], 0
      %s26 = sshll.u32 %s1, 4
      %s27 = int_to_ptr.hbm [resolvable:$true] %s26
      %s28 = sshll.u32 [#allocation5], 4
      %s29 = int_to_ptr.vmem [resolvable:$true] %s28
      %34 = dma.hbm_to_vmem [thread:$0]  %s27, 2048, %s29, [#allocation6], 128, 128, 8
    $region9: #{tpu_custom_call.1} parent=1 // pred_fallthru
      _
    // Predicated region
    $region10: #{tpu_custom_call.1} parent=1 // pred_check
      _
    $region11: #{tpu_custom_call.1} parent=1 // pred_check_branch
      %36 = sbr.rel (0) target = $region13
    $region12: #{tpu_custom_call.1} parent=1 // pred_region
      _
    $region13: #{tpu_custom_call.1} parent=1 // pred_fallthru
      _
    // Predicated region
    $region14: #{tpu_custom_call.1} parent=1 // pred_check
      _
    $region15: #{tpu_custom_call.1} parent=1 // pred_check_branch
      %38 = sbr.rel (0) target = $region17
    $region16: #{tpu_custom_call.1} parent=1 // pred_region
      %40 = dma.done [#allocation3], 128
    $region17: #{tpu_custom_call.1} parent=1 // pred_fallthru
      _
    // Predicated region
    $region18: #{tpu_custom_call.1} parent=1 // pred_check
      _
    $region19: #{tpu_custom_call.1} parent=1 // pred_check_branch
      %42 = sbr.rel (0) target = $region21
    $region20: #{tpu_custom_call.1} parent=1 // pred_region
      %44 = dma.done [#allocation6], 2048
    $region21: #{tpu_custom_call.1} parent=1 // pred_fallthru
      _
    %v45 = vld [vmem:[#allocation2] sm:$0xff]
    %v46 = vld [vmem:[#allocation5] sm:$0xff]
    %v47 = vld [vmem:[#allocation5 + $0x8] sm:$0xff]
    %v48 = vld [vmem:[#allocation5 + $0x10] sm:$0xff]
    %v49 = vld [vmem:[#allocation5 + $0x18] sm:$0xff]
    %v50 = vld [vmem:[#allocation5 + $0x20] sm:$0xff]
    %v51 = vld [vmem:[#allocation5 + $0x28] sm:$0xff]
    %v52 = vld [vmem:[#allocation5 + $0x30] sm:$0xff]
    %v53 = vld [vmem:[#allocation5 + $0x38] sm:$0xff]
    %v54 = vld [vmem:[#allocation5 + $0x40] sm:$0xff]
    %v55 = vld [vmem:[#allocation5 + $0x48] sm:$0xff]
    %v56 = vld [vmem:[#allocation5 + $0x50] sm:$0xff]
    %v57 = vld [vmem:[#allocation5 + $0x58] sm:$0xff]
    %v58 = vld [vmem:[#allocation5 + $0x60] sm:$0xff]
    %v59 = vld [vmem:[#allocation5 + $0x68] sm:$0xff]
    %v60 = vld [vmem:[#allocation5 + $0x70] sm:$0xff]
    %v61 = vld [vmem:[#allocation5 + $0x78] sm:$0xff]
    %v62 = vld [vmem:[%s2] sm:$0x1]
    %v64 = vperm.slane %v62, 0
    %66 = vmatpush.msra.mxu0 %v61
    %67 = vmatpush.msra.mxu0 %v60
    %68 = vmatpush.msra.mxu0 %v59
    %69 = vmatpush.msra.mxu0 %v58
    %70 = vmatpush.msra.mxu0 %v57
    %71 = vmatpush.msra.mxu0 %v56
    %72 = vmatpush.msra.mxu0 %v55
    %73 = vmatpush.msra.mxu0 %v54
    %74 = vmatpush.msra.mxu0 %v53
    %75 = vmatpush.msra.mxu0 %v52
    %76 = vmatpush.msra.mxu0 %v51
    %77 = vmatpush.msra.mxu0 %v50
    %78 = vmatpush.msra.mxu0 %v49
    %79 = vmatpush.msra.mxu0 %v48
    %80 = vmatpush.msra.mxu0 %v47
    %81 = vmatpush.msra.mxu0 %v46
    %82 = vmatmul.f32.gmra.mxu0 %v45
    %v83 = vpop.f32.mrf.mxu0
    %v84 = vadd.f32 %v64, %v83
    %85 = vdwg.mxu0
    %86 = vst [vmem:[#allocation7] sm:$0xff] %v84
    // Predicated region
    $region22: #{tpu_custom_call.1} parent=1 // pred_check
      _
    $region23: #{tpu_custom_call.1} parent=1 // pred_check_branch
      %88 = sbr.rel (0) target = $region25
    $region24: #{tpu_custom_call.1} parent=1 // pred_region
      %90 = vsyncadd [#allocation4], 0
      %s92 = sshll.u32 [#allocation7], 4
      %s93 = int_to_ptr.vmem [resolvable:$true] %s92
      %s94 = sshll.u32 %s3, 4
      %s95 = int_to_ptr.hbm [resolvable:$true] %s94
      %97 = dma.vmem_to_hbm [thread:$0]  %s93, 128, %s95, [#allocation4]
    $region25: #{tpu_custom_call.1} parent=1 // pred_fallthru
      _
    // Predicated region
    $region26: #{tpu_custom_call.1} parent=1 // pred_check
      _
    $region27: #{tpu_custom_call.1} parent=1 // pred_check_branch
      %99 = sbr.rel (0) target = $region29
    $region28: #{tpu_custom_call.1} parent=1 // pred_region
      %101 = dma.done [#allocation4], 128
    $region29: #{tpu_custom_call.1} parent=1 // pred_fallthru
      _
    %102 = vsyncpa [#allocation3], 1
    %103 = vsyncpa [#allocation6], 1
    %104 = vsyncpa [#allocation4], 1

</llo_original>
